<compile_context>
chip_gen: v7x
topology: tpu7x:2x2x1
jax: 0.10.0
libtpu: 0.0.40
codegen_flags: <defaults>
</compile_context>

<pallas_src>
import functools

import jax
import jax.numpy as jnp
from jax.experimental import pallas as pl
from jax.experimental.pallas import tpu as pltpu


def _actor_kernel(x_ref, w1_ref, b1_ref, w2_ref, b2_ref, out_ref):
    # Hidden layer on the MXU: (TB, 126) @ (126, 32) -> (TB, 32), f32 accum.
    # K stays 126: the compiler masks the lane edge of the x block, so we do
    # not depend on VMEM lane padding being zero.
    h = jnp.dot(x_ref[...], w1_ref[...], preferred_element_type=jnp.float32)
    # Bias (1, 32) broadcasts along sublanes; fuse with ReLU (VPU).
    h = jnp.maximum(h + b1_ref[...], 0.0)
    # Output layer (N=1): VPU multiply + cross-lane reduce (XLU) + SMEM scalar
    # bias instead of a second (degenerate) MXU matmul.
    y = jnp.sum(h * w2_ref[...], axis=-1, keepdims=True) + b2_ref[0]  # (TB, 1)
    out_ref[...] = y.astype(out_ref.dtype)


@functools.partial(jax.jit, static_argnames=("max_tb",))
def actor_forward(x, w1, b1, w2, b2, *, max_tb=4096):
    """x: (B, D_in) f32; w1: (D_in, H); b1: (H,); w2: (H, 1); b2: (1,).
    Returns (B,) f32, matching torch.squeeze(fc2(relu(fc1(x))), dim=-1)."""
    B, D_in = x.shape
    H = w1.shape[1]

    # Batch tile (sublane axis, multiple of 8).  Big tiles amortize per-step
    # pipeline overhead; the cap keeps double-buffered VMEM well under the
    # scoped default on every generation (x tile + out tile ~4 MiB each,
    # double-buffered ~8 MiB total at TB=4096).  Mid-size batches are split
    # into >=2 tiles so both v7x TensorCores get work.
    B_sub = 8 * pl.cdiv(B, 8)
    if B_sub > max_tb:
        TB = max_tb
    elif B_sub >= 2048:
        TB = 8 * pl.cdiv(pl.cdiv(B_sub, 2), 8)   # force 2 tiles (v7x megacore)
    else:
        TB = B_sub                               # single whole-batch tile
    B_pad = TB * pl.cdiv(B, TB)
    n_tiles = B_pad // TB

    x = x.astype(jnp.float32)
    if B_pad != B:
        # Batch-padding rows only; their outputs are sliced off below.
        x = jnp.pad(x, ((0, B_pad - B), (0, 0)))

    w1c = w1.astype(jnp.float32)                    # (D_in, H), resident
    b1c = b1.astype(jnp.float32).reshape(1, H)      # (1, H),    resident
    w2c = w2.astype(jnp.float32).reshape(1, H)      # (1, H),    resident
    b2s = b2.astype(jnp.float32).reshape(1)         # scalar ->  SMEM

    out = pl.pallas_call(
        _actor_kernel,
        out_shape=jax.ShapeDtypeStruct((B_pad, 1), jnp.float32),
        grid=(n_tiles,),
        in_specs=[
            pl.BlockSpec((TB, D_in), lambda i: (i, 0)),          # x tile (natural layout)
            pl.BlockSpec((D_in, H), lambda i: (0, 0)),           # w1, resident
            pl.BlockSpec((1, H), lambda i: (0, 0)),              # b1, resident
            pl.BlockSpec((1, H), lambda i: (0, 0)),              # w2 (as (1,H)), resident
            pl.BlockSpec(memory_space=pltpu.MemorySpace.SMEM),   # b2 scalar
        ],
        out_specs=pl.BlockSpec((TB, 1), lambda i: (i, 0)),
        compiler_params=pltpu.CompilerParams(
            dimension_semantics=("parallel",),
            vmem_limit_bytes=32 * 1024 * 1024,
        ),
    )(x, w1c, b1c, w2c, b2s)

    # (B_pad, 1) -> (B,): drop batch padding; this is the torch.squeeze(dim=-1).
    return out[:B, 0]


def _init_params(key, dim_list=(126, 32, 1)):
    """Deterministic PyTorch-Linear-style init (uniform(-1/sqrt(fan_in), ...)),
    weights returned already transposed to (in, out)."""
    params = []
    for i in range(len(dim_list) - 1):
        fan_in, fan_out = dim_list[i], dim_list[i + 1]
        key, kw, kb = jax.random.split(key, 3)
        bound = 1.0 / jnp.sqrt(fan_in)
        w = jax.random.uniform(kw, (fan_in, fan_out), jnp.float32, -bound, bound)
        b = jax.random.uniform(kb, (fan_out,), jnp.float32, -bound, bound)
        params.append((w, b))
    return params


def _reference(x, w1, b1, w2, b2):
    h = jnp.maximum(x @ w1 + b1, 0.0)
    return jnp.squeeze(h @ w2 + b2, axis=-1)


if __name__ == "__main__":
    key = jax.random.PRNGKey(0)
    D_IN, H, D_OUT = 126, 32, 1
    (w1, b1), (w2, b2) = _init_params(key, (D_IN, H, D_OUT))

    # Small-batch case (the module's typical use): single tile, grid of 1.
    key, kx = jax.random.split(key)
    B = 8
    x = jax.random.normal(kx, (B, D_IN), jnp.float32)
    y = jax.block_until_ready(actor_forward(x, w1, b1, w2, b2))
    ref = _reference(x, w1, b1, w2, b2)
    assert y.shape == (B,)
    assert jnp.allclose(y, ref, atol=1e-5, rtol=1e-5)

    # Mid-size batch: still a single whole-batch tile (no grid overhead).
    key, kx2 = jax.random.split(key)
    B2 = 1000
    x2 = jax.random.normal(kx2, (B2, D_IN), jnp.float32)
    y2 = jax.block_until_ready(actor_forward(x2, w1, b1, w2, b2))
    ref2 = _reference(x2, w1, b1, w2, b2)
    assert y2.shape == (B2,)
    assert jnp.allclose(y2, ref2, atol=1e-5, rtol=1e-5)

    # Large batch exercising the tiled grid (TB=4096, 3 tiles, batch padding).
    key, kx3 = jax.random.split(key)
    B3 = 10000
    x3 = jax.random.normal(kx3, (B3, D_IN), jnp.float32)
    y3 = jax.block_until_ready(actor_forward(x3, w1, b1, w2, b2))
    ref3 = _reference(x3, w1, b1, w2, b2)
    assert y3.shape == (B3,)
    assert jnp.allclose(y3, ref3, atol=1e-5, rtol=1e-5)

    print("KERNEL_OK")
</pallas_src>

<mosaic_0001>
module attributes {stable_mosaic.version = 11 : i64} {
  func.func @_actor_kernel(%arg0: i32, %arg1: memref<8x126xf32, #tpu.memory_space<vmem>>, %arg2: memref<126x32xf32, #tpu.memory_space<vmem>>, %arg3: memref<1x32xf32, #tpu.memory_space<vmem>>, %arg4: memref<1x32xf32, #tpu.memory_space<vmem>>, %arg5: memref<1xf32, #tpu.memory_space<smem>>, %arg6: memref<8x1xf32, #tpu.memory_space<vmem>>) attributes {dimension_semantics = [#tpu.dimension_semantics<parallel>], iteration_bounds = array<i64: 1>, scalar_prefetch = 0 : i64, scratch_operands = 0 : i64, tpu.core_type = #tpu.core_type<tc>, window_params = [{transform_indices = @transform_0, window_bounds = array<i64: 8, 126>}, {pipeline_mode = #tpu.pipeline_mode<synchronous>, transform_indices = @transform_1, window_bounds = array<i64: 126, 32>}, {pipeline_mode = #tpu.pipeline_mode<synchronous>, transform_indices = @transform_2, window_bounds = array<i64: 1, 32>}, {pipeline_mode = #tpu.pipeline_mode<synchronous>, transform_indices = @transform_3, window_bounds = array<i64: 1, 32>}, {transform_indices = @transform_4, window_bounds = array<i64: 1>}, {transform_indices = @transform_5, window_bounds = array<i64: 8, 1>}]} {
    %c0 = arith.constant 0 : index
    %c0_0 = arith.constant 0 : index
    %0 = vector.load %arg1[%c0, %c0_0] : memref<8x126xf32, #tpu.memory_space<vmem>>, vector<8x126xf32>
    %c0_1 = arith.constant 0 : index
    %c0_2 = arith.constant 0 : index
    %1 = vector.load %arg2[%c0_1, %c0_2] : memref<126x32xf32, #tpu.memory_space<vmem>>, vector<126x32xf32>
    %cst = arith.constant dense<0.000000e+00> : vector<8x32xf32>
    %2 = tpu.matmul %0, %1, %cst {dimension_numbers = #tpu.dot_dimension_numbers<[1], [0], [0], [1], [0, 0, 1, 1], [], []>} : vector<8x126xf32>, vector<126x32xf32>, vector<8x32xf32> -> vector<8x32xf32>
    %c0_3 = arith.constant 0 : index
    %c0_4 = arith.constant 0 : index
    %3 = vector.load %arg3[%c0_3, %c0_4] : memref<1x32xf32, #tpu.memory_space<vmem>>, vector<1x32xf32>
    %4 = vector.broadcast %3 : vector<1x32xf32> to vector<8x32xf32>
    %5 = arith.addf %2, %4 : vector<8x32xf32>
    %cst_5 = arith.constant 0.000000e+00 : f32
    %6 = vector.broadcast %cst_5 : f32 to vector<8x32xf32>
    %7 = arith.maximumf %5, %6 : vector<8x32xf32>
    %c0_6 = arith.constant 0 : index
    %c0_7 = arith.constant 0 : index
    %8 = vector.load %arg4[%c0_6, %c0_7] : memref<1x32xf32, #tpu.memory_space<vmem>>, vector<1x32xf32>
    %9 = vector.broadcast %8 : vector<1x32xf32> to vector<8x32xf32>
    %10 = arith.mulf %7, %9 : vector<8x32xf32>
    %cst_8 = arith.constant dense<0.000000e+00> : vector<8xf32>
    %11 = vector.multi_reduction <add>, %10, %cst_8 [1] : vector<8x32xf32> to vector<8xf32>
    %12 = vector.shape_cast %11 : vector<8xf32> to vector<8x1xf32>
    %c0_9 = arith.constant 0 : index
    %13 = memref.load %arg5[%c0_9] : memref<1xf32, #tpu.memory_space<smem>>
    %14 = vector.broadcast %13 : f32 to vector<8x1xf32>
    %15 = arith.addf %12, %14 : vector<8x1xf32>
    %c0_10 = arith.constant 0 : index
    %c0_11 = arith.constant 0 : index
    %16 = vector.load %arg6[%c0_10, %c0_11] : memref<8x1xf32, #tpu.memory_space<vmem>>, vector<8x1xf32>
    tpu.vector_store %arg6[%c0_10, %c0_11], %15 {strides = array<i32>} : memref<8x1xf32, #tpu.memory_space<vmem>>, vector<8x1xf32>,
    return
  }
  func.func @transform_0(%arg0: i32) -> (i32, i32) {
    %c0_i32 = arith.constant 0 : i32
    %c0_i32_0 = arith.constant 0 : i32
    return %arg0, %c0_i32 : i32, i32
  }
  func.func @transform_1(%arg0: i32) -> (i32, i32) {
    %c0_i32 = arith.constant 0 : i32
    %c0_i32_0 = arith.constant 0 : i32
    %c0_i32_1 = arith.constant 0 : i32
    return %c0_i32, %c0_i32_0 : i32, i32
  }
  func.func @transform_2(%arg0: i32) -> (i32, i32) {
    %c0_i32 = arith.constant 0 : i32
    %c0_i32_0 = arith.constant 0 : i32
    %c0_i32_1 = arith.constant 0 : i32
    return %c0_i32, %c0_i32_0 : i32, i32
  }
  func.func @transform_3(%arg0: i32) -> (i32, i32) {
    %c0_i32 = arith.constant 0 : i32
    %c0_i32_0 = arith.constant 0 : i32
    %c0_i32_1 = arith.constant 0 : i32
    return %c0_i32, %c0_i32_0 : i32, i32
  }
  func.func @transform_4(%arg0: i32) -> i32 {
    %c0_i32 = arith.constant 0 : i32
    %c0_i32_0 = arith.constant 0 : i32
    return %c0_i32 : i32
  }
  func.func @transform_5(%arg0: i32) -> (i32, i32) {
    %c0_i32 = arith.constant 0 : i32
    %c0_i32_0 = arith.constant 0 : i32
    return %arg0, %c0_i32 : i32, i32
  }
}

</mosaic_0001>

<llo_original>
// kernel: actor_forward.1
$region0: #{actor_forward.1}
  #allocation0 [shape = 'u32[]', space=smem, size = 0x4, offset = 0x4, fixed_abs, tag = 'smem constant byte address 0x4 - core index']
  #allocation1 [shape = 'u32[144,128]{1,0:T(1,128)}', space=vmem, size = 0x12000, scoped, tag = 'internal scratch']
  #allocation2 [shape = 'f32[1]{0:T(128)S(6)}', space=smem, size = 0x200, scoped, tag = 'scoped memory for actor_forward.1']
  %s0 = inlined_call_operand.vmem [shape: f32[8,126], index: 0, kind: input, shape index: {}]
  %s1 = inlined_call_operand.vmem [shape: f32[126,32], index: 1, kind: input, shape index: {}]
  %s2 = inlined_call_operand.vmem [shape: f32[1,32], index: 2, kind: input, shape index: {}]
  %s3 = inlined_call_operand.vmem [shape: f32[1,32], index: 3, kind: input, shape index: {}]
  %s4 = inlined_call_operand.<no memory space> [shape: f32[1], index: 4, kind: input, shape index: {}]
  %s5 = inlined_call_operand.vmem [shape: f32[8,1], index: 5, kind: output, shape index: {}]
  %s6 = sld [smem:[#allocation0]]
  $region30: #{actor_forward.1} parent=0
    _
  %s8 = ssub.s32 1, %s6
  %s9 = scalar_select 0, %s8, %s6
  %10 = sst [smem:[#allocation2]] %s4
  // Predicated region
  $region2: #{actor_forward.1} parent=0 // pred_check
    _
  $region3: #{actor_forward.1} parent=0 // pred_check_branch
    %12 = sbr.rel (0) target = $region5
  $region4: #{actor_forward.1} parent=0 // pred_region
    _
  $region5: #{actor_forward.1} parent=0 // pred_fallthru
    _
  // Predicated region
  $region6: #{actor_forward.1} parent=0 // pred_check
    _
  $region7: #{actor_forward.1} parent=0 // pred_check_branch
    %14 = sbr.rel (0) target = $region9
  $region8: #{actor_forward.1} parent=0 // pred_region
    _
  $region9: #{actor_forward.1} parent=0 // pred_fallthru
    _
  // Predicated region
  $region10: #{actor_forward.1} parent=0 // pred_check
    _
  $region11: #{actor_forward.1} parent=0 // pred_check_branch
    %16 = sbr.rel (0) target = $region13
  $region12: #{actor_forward.1} parent=0 // pred_region
    _
  $region13: #{actor_forward.1} parent=0 // pred_fallthru
    _
  // Predicated region
  $region14: #{actor_forward.1} parent=0 // pred_check
    _
  $region15: #{actor_forward.1} parent=0 // pred_check_branch
    %18 = sbr.rel (0) target = $region17
  $region16: #{actor_forward.1} parent=0 // pred_region
    _
  $region17: #{actor_forward.1} parent=0 // pred_fallthru
    _
  // Predicated region
  $region18: #{actor_forward.1} parent=0 // pred_check
    _
  $region19: #{actor_forward.1} parent=0 // pred_check_branch
    %20 = sbr.rel (0) target = $region21
  $region20: #{actor_forward.1} parent=0 // pred_region
    _
  $region21: #{actor_forward.1} parent=0 // pred_fallthru
    _
  %v21 = vld [vmem:[%s0] sm:$0xff]
  %v22 = vld [vmem:[%s1] sm:$0xff]
  %v23 = vld [vmem:[%s1 + $0x8] sm:$0xff]
  %v24 = vld [vmem:[%s1 + $0x10] sm:$0xff]
  %v25 = vld [vmem:[%s1 + $0x18] sm:$0xff]
  %v26 = vld [vmem:[%s1 + $0x20] sm:$0xff]
  %v27 = vld [vmem:[%s1 + $0x28] sm:$0xff]
  %v28 = vld [vmem:[%s1 + $0x30] sm:$0xff]
  %v29 = vld [vmem:[%s1 + $0x38] sm:$0xff]
  %v30 = vld [vmem:[%s1 + $0x40] sm:$0xff]
  %v31 = vld [vmem:[%s1 + $0x48] sm:$0xff]
  %v32 = vld [vmem:[%s1 + $0x50] sm:$0xff]
  %v33 = vld [vmem:[%s1 + $0x58] sm:$0xff]
  %v34 = vld [vmem:[%s1 + $0x60] sm:$0xff]
  %v35 = vld [vmem:[%s1 + $0x68] sm:$0xff]
  %v36 = vld [vmem:[%s1 + $0x70] sm:$0xff]
  %v37 = vld [vmem:[%s1 + $0x78] sm:$0x3f]
  %v38 = vld [vmem:[%s2] sm:$0x1]
  %v40 = vlaneseq
  %v41 = vshrl.u32 %v40, 7
  %v42 = vsub.s32 0, %v41
  %v43 = vrot.slane %v38, %v42
  %vm45 = vcmask 1031168
  %v47 = vsel %vm45, %v21, 0
  %vm49 = vcmask 1045504
  %v51 = vsel %vm49, %v37, 0
  %53 = vmatprep.subr.mxu0 0.0
  %54 = vmatpush1.msra.mxu0 %v22
  %55 = vmatprep.subr.mxu0 0.0
  %56 = vmatpush1.msra.mxu0 %v23
  %57 = vmatprep.subr.mxu0 0.0
  %58 = vmatpush1.msra.mxu0 %v24
  %59 = vmatprep.subr.mxu0 0.0
  %60 = vmatpush1.msra.mxu0 %v25
  %61 = vmatprep.subr.mxu0 0.0
  %62 = vmatpush1.msra.mxu0 %v26
  %63 = vmatprep.subr.mxu0 0.0
  %64 = vmatpush1.msra.mxu0 %v27
  %65 = vmatprep.subr.mxu0 0.0
  %66 = vmatpush1.msra.mxu0 %v28
  %67 = vmatprep.subr.mxu0 0.0
  %68 = vmatpush1.msra.mxu0 %v29
  %69 = vmatprep.subr.mxu0 0.0
  %70 = vmatpush1.msra.mxu0 %v30
  %71 = vmatprep.subr.mxu0 0.0
  %72 = vmatpush1.msra.mxu0 %v31
  %73 = vmatprep.subr.mxu0 0.0
  %74 = vmatpush1.msra.mxu0 %v32
  %75 = vmatprep.subr.mxu0 0.0
  %76 = vmatpush1.msra.mxu0 %v33
  %77 = vmatprep.subr.mxu0 0.0
  %78 = vmatpush1.msra.mxu0 %v34
  %79 = vmatprep.subr.mxu0 0.0
  %80 = vmatpush1.msra.mxu0 %v35
  %81 = vmatprep.subr.mxu0 0.0
  %82 = vmatpush1.msra.mxu0 %v36
  %83 = vmatprep.subr.mxu0 0.0
  %84 = vmatpush1.msra.mxu0 %v51
  %85 = vmatprep.subr.mxu0 0.0
  %86 = vmatpush1.msra.mxu0 0.0
  %87 = vmatprep.subr.mxu0 0.0
  %88 = vmatpush1.msra.mxu0 0.0
  %89 = vmatprep.subr.mxu0 0.0
  %90 = vmatpush1.msra.mxu0 0.0
  %91 = vmatprep.subr.mxu0 0.0
  %92 = vmatpush1.msra.mxu0 0.0
  %93 = vmatprep.subr.mxu0 0.0
  %94 = vmatpush1.msra.mxu0 0.0
  %95 = vmatprep.subr.mxu0 0.0
  %96 = vmatpush1.msra.mxu0 0.0
  %97 = vmatprep.subr.mxu0 0.0
  %98 = vmatpush1.msra.mxu0 0.0
  %99 = vmatprep.subr.mxu0 0.0
  %100 = vmatpush1.msra.mxu0 0.0
  %101 = vmatprep.subr.mxu0 0.0
  %102 = vmatpush1.msra.mxu0 0.0
  %103 = vmatprep.subr.mxu0 0.0
  %104 = vmatpush1.msra.mxu0 0.0
  %105 = vmatprep.subr.mxu0 0.0
  %106 = vmatpush1.msra.mxu0 0.0
  %107 = vmatprep.subr.mxu0 0.0
  %108 = vmatpush1.msra.mxu0 0.0
  %109 = vmatprep.subr.mxu0 0.0
  %110 = vmatpush1.msra.mxu0 0.0
  %111 = vmatprep.subr.mxu0 0.0
  %112 = vmatpush1.msra.mxu0 0.0
  %113 = vmatprep.subr.mxu0 0.0
  %114 = vmatpush1.msra.mxu0 0.0
  %115 = vmatprep.subr.mxu0 0.0
  %116 = vmatpush1.msra.mxu0 0.0
  %117 = vmatprep.mubr.f32.mxu0 0.0
  %118 = vmatmul.mubr.f32.gmra.mrb[0].mxu0 %v47
  %v119 = vpop.f32.mrb[0].mxu0
  %v120 = vadd.f32 %v43, %v119
  %v121 = vpop.f32.mrb[0].mxu0
  %122 = vdwg.mxu0
  %v123 = vmax.f32 %v120, 0.0
  %v124 = vld [vmem:[%s3] sm:$0x1]
  %v126 = vlaneseq
  %v127 = vshrl.u32 %v126, 7
  %v128 = vsub.s32 0, %v127
  %v129 = vrot.slane %v124, %v128
  %v131 = vmul.f32 %v123, %v129
  %vm132 = vcmask 261120
  %v133 = vsel %vm132, %v131, 0.0
  %134 = vadd.xlane.f32.xlu0 %v133
  %v135 = vpop.xlane.xlu0 %134
  %s136 = sld [smem:[#allocation2]]
  %v137 = vstv %s136
  %v138 = vadd.f32 %v135, %v137
  %vm139 = vcmask 7168
  %140 = vst.msk [vmem:[%s5] sm:$0xff] %vm139, %v138
  // Predicated region
  $region22: #{actor_forward.1} parent=0 // pred_check
    _
  $region23: #{actor_forward.1} parent=0 // pred_check_branch
    %142 = sbr.rel (0) target = $region25
  $region24: #{actor_forward.1} parent=0 // pred_region
    _
  $region25: #{actor_forward.1} parent=0 // pred_fallthru
    _
  // Predicated region
  $region26: #{actor_forward.1} parent=0 // pred_check
    _
  $region27: #{actor_forward.1} parent=0 // pred_check_branch
    %144 = sbr.rel (0) target = $region29
  $region28: #{actor_forward.1} parent=0 // pred_region
    _
  $region29: #{actor_forward.1} parent=0 // pred_fallthru
    _

</llo_original>
